<compile_context>
chip_gen: v6e
topology: v6e:2x2x1
jax: 0.10.0
libtpu: 0.0.40
codegen_flags: <defaults>
</compile_context>

<pallas_src>
import jax
import jax.numpy as jnp
from jax.experimental import pallas as pl
from jax.experimental.pallas import tpu as pltpu

_BN_EPS = 1e-5


def _make_beta_kernel(num_layers):
    """Kernel refs: (x, [w_l, scale_l, shift_l] * num_layers, out)."""

    def kernel(*refs):
        x_ref = refs[0]
        o_ref = refs[-1]

        h = x_ref[...].astype(jnp.float32)
        for l in range(num_layers):                       # statically unrolled
            w_ref, s_ref, t_ref = refs[1 + 3 * l: 4 + 3 * l]
            # Linear (no bias): MXU matmul, f32 accumulation.
            h = jnp.dot(h, w_ref[...], preferred_element_type=jnp.float32)
            # SiLU: x * sigmoid(x)  (exp on EUP, mul/add on VPU).
            h = h * (1.0 / (1.0 + jnp.exp(-h)))
            # BatchNorm1d (eval) folded into per-channel affine.
            h = h * s_ref[...] + t_ref[...]
        o_ref[...] = h.astype(o_ref.dtype)

    return kernel


def beta_model_forward(x, weights, bn_params, *, block_b=256):
    """Fused BetaModel forward.

    x:         [B, num_chrs] float32
    weights:   list of [d_in, d_out] matrices (torch Linear.weight transposed)
    bn_params: list of (gamma, beta, running_mean, running_var), each [d_out]
    returns:   [B, num_factors] float32
    """
    B, d_in0 = x.shape
    num_layers = len(weights)
    d_out = weights[-1].shape[1]

    # Fold eval-mode BatchNorm1d into scale/shift applied after SiLU.
    scales, shifts = [], []
    for gamma, beta, mean, var in bn_params:
        s = gamma * jax.lax.rsqrt(var + _BN_EPS)
        t = beta - mean * s
        scales.append(s.reshape(1, -1).astype(jnp.float32))
        shifts.append(t.reshape(1, -1).astype(jnp.float32))

    # Batch tiling: single grid step at small B, parallel tiles at large B.
    tb = min(B, block_b)
    grid = (pl.cdiv(B, tb),)

    def _full(shape):
        return pl.BlockSpec(shape, lambda i: (0,) * len(shape))

    in_specs = [pl.BlockSpec((tb, d_in0), lambda i: (i, 0))]
    operands = [x]
    for w, s, t in zip(weights, scales, shifts):
        in_specs += [_full(w.shape), _full(s.shape), _full(t.shape)]
        operands += [w, s, t]

    out = pl.pallas_call(
        _make_beta_kernel(num_layers),
        out_shape=jax.ShapeDtypeStruct((B, d_out), jnp.float32),
        grid_spec=pltpu.PrefetchScalarGridSpec(
            num_scalar_prefetch=0,
            grid=grid,
            in_specs=in_specs,
            out_specs=pl.BlockSpec((tb, d_out), lambda i: (i, 0)),
        ),
        compiler_params=pltpu.CompilerParams(
            dimension_semantics=("parallel",)),
    )(*operands)
    return out


def _reference(x, weights, bn_params):
    """Pure-JAX reference: Linear(no bias) -> SiLU -> BatchNorm1d(eval)."""
    h = x
    for w, (gamma, beta, mean, var) in zip(weights, bn_params):
        h = h @ w
        h = h * jax.nn.sigmoid(h)
        h = (h - mean) * jax.lax.rsqrt(var + _BN_EPS) * gamma + beta
    return h


if __name__ == "__main__":
    # BetaModel defaults: num_chrs=95, arch=[32,16,8], num_factors=6
    num_chrs, hidden_arch, num_factors = 95, [32, 16, 8], 6
    dims = [num_chrs] + hidden_arch + [num_factors]
    B = 8

    key = jax.random.PRNGKey(0)
    keys = jax.random.split(key, 1 + 5 * (len(dims) - 1))
    x = jax.random.normal(keys[0], (B, num_chrs), dtype=jnp.float32)

    weights, bn_params = [], []
    k = 1
    for din, dout in zip(dims[:-1], dims[1:]):
        w = jax.random.normal(keys[k], (din, dout), dtype=jnp.float32)
        w = w / jnp.sqrt(jnp.float32(din)); k += 1
        gamma = 1.0 + 0.1 * jax.random.normal(keys[k], (dout,), dtype=jnp.float32); k += 1
        beta = 0.1 * jax.random.normal(keys[k], (dout,), dtype=jnp.float32); k += 1
        mean = 0.1 * jax.random.normal(keys[k], (dout,), dtype=jnp.float32); k += 1
        var = jnp.abs(jax.random.normal(keys[k], (dout,), dtype=jnp.float32)) + 0.5; k += 1
        weights.append(w)
        bn_params.append((gamma, beta, mean, var))

    out = beta_model_forward(x, weights, bn_params)
    jax.block_until_ready(out)

    ref = _reference(x, weights, bn_params)
    assert out.shape == (B, num_factors)
    assert jnp.allclose(out, ref, atol=1e-5, rtol=1e-5), float(
        jnp.max(jnp.abs(out - ref)))

    print("KERNEL_OK")
</pallas_src>

<mosaic_0001>
module attributes {stable_mosaic.version = 11 : i64} {
  func.func @kernel(%arg0: i32, %arg1: memref<8x95xf32, #tpu.memory_space<vmem>>, %arg2: memref<95x32xf32, #tpu.memory_space<vmem>>, %arg3: memref<1x32xf32, #tpu.memory_space<vmem>>, %arg4: memref<1x32xf32, #tpu.memory_space<vmem>>, %arg5: memref<32x16xf32, #tpu.memory_space<vmem>>, %arg6: memref<1x16xf32, #tpu.memory_space<vmem>>, %arg7: memref<1x16xf32, #tpu.memory_space<vmem>>, %arg8: memref<16x8xf32, #tpu.memory_space<vmem>>, %arg9: memref<1x8xf32, #tpu.memory_space<vmem>>, %arg10: memref<1x8xf32, #tpu.memory_space<vmem>>, %arg11: memref<8x6xf32, #tpu.memory_space<vmem>>, %arg12: memref<1x6xf32, #tpu.memory_space<vmem>>, %arg13: memref<1x6xf32, #tpu.memory_space<vmem>>, %arg14: memref<8x6xf32, #tpu.memory_space<vmem>>) attributes {dimension_semantics = [#tpu.dimension_semantics<parallel>], iteration_bounds = array<i64: 1>, scalar_prefetch = 0 : i64, scratch_operands = 0 : i64, tpu.core_type = #tpu.core_type<tc>, window_params = [{transform_indices = @transform_0, window_bounds = array<i64: 8, 95>}, {pipeline_mode = #tpu.pipeline_mode<synchronous>, transform_indices = @transform_1, window_bounds = array<i64: 95, 32>}, {pipeline_mode = #tpu.pipeline_mode<synchronous>, transform_indices = @transform_2, window_bounds = array<i64: 1, 32>}, {pipeline_mode = #tpu.pipeline_mode<synchronous>, transform_indices = @transform_3, window_bounds = array<i64: 1, 32>}, {pipeline_mode = #tpu.pipeline_mode<synchronous>, transform_indices = @transform_4, window_bounds = array<i64: 32, 16>}, {pipeline_mode = #tpu.pipeline_mode<synchronous>, transform_indices = @transform_5, window_bounds = array<i64: 1, 16>}, {pipeline_mode = #tpu.pipeline_mode<synchronous>, transform_indices = @transform_6, window_bounds = array<i64: 1, 16>}, {pipeline_mode = #tpu.pipeline_mode<synchronous>, transform_indices = @transform_7, window_bounds = array<i64: 16, 8>}, {pipeline_mode = #tpu.pipeline_mode<synchronous>, transform_indices = @transform_8, window_bounds = array<i64: 1, 8>}, {pipeline_mode = #tpu.pipeline_mode<synchronous>, transform_indices = @transform_9, window_bounds = array<i64: 1, 8>}, {pipeline_mode = #tpu.pipeline_mode<synchronous>, transform_indices = @transform_10, window_bounds = array<i64: 8, 6>}, {pipeline_mode = #tpu.pipeline_mode<synchronous>, transform_indices = @transform_11, window_bounds = array<i64: 1, 6>}, {pipeline_mode = #tpu.pipeline_mode<synchronous>, transform_indices = @transform_12, window_bounds = array<i64: 1, 6>}, {transform_indices = @transform_13, window_bounds = array<i64: 8, 6>}]} {
    %c0 = arith.constant 0 : index
    %c0_0 = arith.constant 0 : index
    %0 = vector.load %arg1[%c0, %c0_0] : memref<8x95xf32, #tpu.memory_space<vmem>>, vector<8x95xf32>
    %c0_1 = arith.constant 0 : index
    %c0_2 = arith.constant 0 : index
    %1 = vector.load %arg2[%c0_1, %c0_2] : memref<95x32xf32, #tpu.memory_space<vmem>>, vector<95x32xf32>
    %cst = arith.constant dense<0.000000e+00> : vector<8x32xf32>
    %2 = tpu.matmul %0, %1, %cst {dimension_numbers = #tpu.dot_dimension_numbers<[1], [0], [0], [1], [0, 0, 1, 1], [], []>} : vector<8x95xf32>, vector<95x32xf32>, vector<8x32xf32> -> vector<8x32xf32>
    %cst_3 = arith.constant 0.000000e+00 : f32
    %3 = vector.broadcast %cst_3 : f32 to vector<8x32xf32>
    %4 = arith.subf %3, %2 : vector<8x32xf32>
    %5 = math.exp %4 : vector<8x32xf32>
    %cst_4 = arith.constant 1.000000e+00 : f32
    %6 = vector.broadcast %cst_4 : f32 to vector<8x32xf32>
    %7 = arith.addf %6, %5 : vector<8x32xf32>
    %cst_5 = arith.constant 1.000000e+00 : f32
    %8 = vector.broadcast %cst_5 : f32 to vector<8x32xf32>
    %9 = arith.divf %8, %7 : vector<8x32xf32>
    %10 = arith.mulf %2, %9 : vector<8x32xf32>
    %c0_6 = arith.constant 0 : index
    %c0_7 = arith.constant 0 : index
    %11 = vector.load %arg3[%c0_6, %c0_7] : memref<1x32xf32, #tpu.memory_space<vmem>>, vector<1x32xf32>
    %12 = vector.broadcast %11 : vector<1x32xf32> to vector<8x32xf32>
    %13 = arith.mulf %10, %12 : vector<8x32xf32>
    %c0_8 = arith.constant 0 : index
    %c0_9 = arith.constant 0 : index
    %14 = vector.load %arg4[%c0_8, %c0_9] : memref<1x32xf32, #tpu.memory_space<vmem>>, vector<1x32xf32>
    %15 = vector.broadcast %14 : vector<1x32xf32> to vector<8x32xf32>
    %16 = arith.addf %13, %15 : vector<8x32xf32>
    %c0_10 = arith.constant 0 : index
    %c0_11 = arith.constant 0 : index
    %17 = vector.load %arg5[%c0_10, %c0_11] : memref<32x16xf32, #tpu.memory_space<vmem>>, vector<32x16xf32>
    %cst_12 = arith.constant dense<0.000000e+00> : vector<8x16xf32>
    %18 = tpu.matmul %16, %17, %cst_12 {dimension_numbers = #tpu.dot_dimension_numbers<[1], [0], [0], [1], [0, 0, 1, 1], [], []>} : vector<8x32xf32>, vector<32x16xf32>, vector<8x16xf32> -> vector<8x16xf32>
    %cst_13 = arith.constant 0.000000e+00 : f32
    %19 = vector.broadcast %cst_13 : f32 to vector<8x16xf32>
    %20 = arith.subf %19, %18 : vector<8x16xf32>
    %21 = math.exp %20 : vector<8x16xf32>
    %cst_14 = arith.constant 1.000000e+00 : f32
    %22 = vector.broadcast %cst_14 : f32 to vector<8x16xf32>
    %23 = arith.addf %22, %21 : vector<8x16xf32>
    %cst_15 = arith.constant 1.000000e+00 : f32
    %24 = vector.broadcast %cst_15 : f32 to vector<8x16xf32>
    %25 = arith.divf %24, %23 : vector<8x16xf32>
    %26 = arith.mulf %18, %25 : vector<8x16xf32>
    %c0_16 = arith.constant 0 : index
    %c0_17 = arith.constant 0 : index
    %27 = vector.load %arg6[%c0_16, %c0_17] : memref<1x16xf32, #tpu.memory_space<vmem>>, vector<1x16xf32>
    %28 = vector.broadcast %27 : vector<1x16xf32> to vector<8x16xf32>
    %29 = arith.mulf %26, %28 : vector<8x16xf32>
    %c0_18 = arith.constant 0 : index
    %c0_19 = arith.constant 0 : index
    %30 = vector.load %arg7[%c0_18, %c0_19] : memref<1x16xf32, #tpu.memory_space<vmem>>, vector<1x16xf32>
    %31 = vector.broadcast %30 : vector<1x16xf32> to vector<8x16xf32>
    %32 = arith.addf %29, %31 : vector<8x16xf32>
    %c0_20 = arith.constant 0 : index
    %c0_21 = arith.constant 0 : index
    %33 = vector.load %arg8[%c0_20, %c0_21] : memref<16x8xf32, #tpu.memory_space<vmem>>, vector<16x8xf32>
    %cst_22 = arith.constant dense<0.000000e+00> : vector<8x8xf32>
    %34 = tpu.matmul %32, %33, %cst_22 {dimension_numbers = #tpu.dot_dimension_numbers<[1], [0], [0], [1], [0, 0, 1, 1], [], []>} : vector<8x16xf32>, vector<16x8xf32>, vector<8x8xf32> -> vector<8x8xf32>
    %cst_23 = arith.constant 0.000000e+00 : f32
    %35 = vector.broadcast %cst_23 : f32 to vector<8x8xf32>
    %36 = arith.subf %35, %34 : vector<8x8xf32>
    %37 = math.exp %36 : vector<8x8xf32>
    %cst_24 = arith.constant 1.000000e+00 : f32
    %38 = vector.broadcast %cst_24 : f32 to vector<8x8xf32>
    %39 = arith.addf %38, %37 : vector<8x8xf32>
    %cst_25 = arith.constant 1.000000e+00 : f32
    %40 = vector.broadcast %cst_25 : f32 to vector<8x8xf32>
    %41 = arith.divf %40, %39 : vector<8x8xf32>
    %42 = arith.mulf %34, %41 : vector<8x8xf32>
    %c0_26 = arith.constant 0 : index
    %c0_27 = arith.constant 0 : index
    %43 = vector.load %arg9[%c0_26, %c0_27] : memref<1x8xf32, #tpu.memory_space<vmem>>, vector<1x8xf32>
    %44 = vector.broadcast %43 : vector<1x8xf32> to vector<8x8xf32>
    %45 = arith.mulf %42, %44 : vector<8x8xf32>
    %c0_28 = arith.constant 0 : index
    %c0_29 = arith.constant 0 : index
    %46 = vector.load %arg10[%c0_28, %c0_29] : memref<1x8xf32, #tpu.memory_space<vmem>>, vector<1x8xf32>
    %47 = vector.broadcast %46 : vector<1x8xf32> to vector<8x8xf32>
    %48 = arith.addf %45, %47 : vector<8x8xf32>
    %c0_30 = arith.constant 0 : index
    %c0_31 = arith.constant 0 : index
    %49 = vector.load %arg11[%c0_30, %c0_31] : memref<8x6xf32, #tpu.memory_space<vmem>>, vector<8x6xf32>
    %cst_32 = arith.constant dense<0.000000e+00> : vector<8x6xf32>
    %50 = tpu.matmul %48, %49, %cst_32 {dimension_numbers = #tpu.dot_dimension_numbers<[1], [0], [0], [1], [0, 0, 1, 1], [], []>} : vector<8x8xf32>, vector<8x6xf32>, vector<8x6xf32> -> vector<8x6xf32>
    %cst_33 = arith.constant 0.000000e+00 : f32
    %51 = vector.broadcast %cst_33 : f32 to vector<8x6xf32>
    %52 = arith.subf %51, %50 : vector<8x6xf32>
    %53 = math.exp %52 : vector<8x6xf32>
    %cst_34 = arith.constant 1.000000e+00 : f32
    %54 = vector.broadcast %cst_34 : f32 to vector<8x6xf32>
    %55 = arith.addf %54, %53 : vector<8x6xf32>
    %cst_35 = arith.constant 1.000000e+00 : f32
    %56 = vector.broadcast %cst_35 : f32 to vector<8x6xf32>
    %57 = arith.divf %56, %55 : vector<8x6xf32>
    %58 = arith.mulf %50, %57 : vector<8x6xf32>
    %c0_36 = arith.constant 0 : index
    %c0_37 = arith.constant 0 : index
    %59 = vector.load %arg12[%c0_36, %c0_37] : memref<1x6xf32, #tpu.memory_space<vmem>>, vector<1x6xf32>
    %60 = vector.broadcast %59 : vector<1x6xf32> to vector<8x6xf32>
    %61 = arith.mulf %58, %60 : vector<8x6xf32>
    %c0_38 = arith.constant 0 : index
    %c0_39 = arith.constant 0 : index
    %62 = vector.load %arg13[%c0_38, %c0_39] : memref<1x6xf32, #tpu.memory_space<vmem>>, vector<1x6xf32>
    %63 = vector.broadcast %62 : vector<1x6xf32> to vector<8x6xf32>
    %64 = arith.addf %61, %63 : vector<8x6xf32>
    %c0_40 = arith.constant 0 : index
    %c0_41 = arith.constant 0 : index
    %65 = vector.load %arg14[%c0_40, %c0_41] : memref<8x6xf32, #tpu.memory_space<vmem>>, vector<8x6xf32>
    tpu.vector_store %arg14[%c0_40, %c0_41], %64 {strides = array<i32>} : memref<8x6xf32, #tpu.memory_space<vmem>>, vector<8x6xf32>,
    return
  }
  func.func @transform_0(%arg0: i32) -> (i32, i32) {
    %c0_i32 = arith.constant 0 : i32
    %c0_i32_0 = arith.constant 0 : i32
    return %arg0, %c0_i32 : i32, i32
  }
  func.func @transform_1(%arg0: i32) -> (i32, i32) {
    %c0_i32 = arith.constant 0 : i32
    %c0_i32_0 = arith.constant 0 : i32
    %c0_i32_1 = arith.constant 0 : i32
    return %c0_i32, %c0_i32_0 : i32, i32
  }
  func.func @transform_2(%arg0: i32) -> (i32, i32) {
    %c0_i32 = arith.constant 0 : i32
    %c0_i32_0 = arith.constant 0 : i32
    %c0_i32_1 = arith.constant 0 : i32
    return %c0_i32, %c0_i32_0 : i32, i32
  }
  func.func @transform_3(%arg0: i32) -> (i32, i32) {
    %c0_i32 = arith.constant 0 : i32
    %c0_i32_0 = arith.constant 0 : i32
    %c0_i32_1 = arith.constant 0 : i32
    return %c0_i32, %c0_i32_0 : i32, i32
  }
  func.func @transform_4(%arg0: i32) -> (i32, i32) {
    %c0_i32 = arith.constant 0 : i32
    %c0_i32_0 = arith.constant 0 : i32
    %c0_i32_1 = arith.constant 0 : i32
    return %c0_i32, %c0_i32_0 : i32, i32
  }
  func.func @transform_5(%arg0: i32) -> (i32, i32) {
    %c0_i32 = arith.constant 0 : i32
    %c0_i32_0 = arith.constant 0 : i32
    %c0_i32_1 = arith.constant 0 : i32
    return %c0_i32, %c0_i32_0 : i32, i32
  }
  func.func @transform_6(%arg0: i32) -> (i32, i32) {
    %c0_i32 = arith.constant 0 : i32
    %c0_i32_0 = arith.constant 0 : i32
    %c0_i32_1 = arith.constant 0 : i32
    return %c0_i32, %c0_i32_0 : i32, i32
  }
  func.func @transform_7(%arg0: i32) -> (i32, i32) {
    %c0_i32 = arith.constant 0 : i32
    %c0_i32_0 = arith.constant 0 : i32
    %c0_i32_1 = arith.constant 0 : i32
    return %c0_i32, %c0_i32_0 : i32, i32
  }
  func.func @transform_8(%arg0: i32) -> (i32, i32) {
    %c0_i32 = arith.constant 0 : i32
    %c0_i32_0 = arith.constant 0 : i32
    %c0_i32_1 = arith.constant 0 : i32
    return %c0_i32, %c0_i32_0 : i32, i32
  }
  func.func @transform_9(%arg0: i32) -> (i32, i32) {
    %c0_i32 = arith.constant 0 : i32
    %c0_i32_0 = arith.constant 0 : i32
    %c0_i32_1 = arith.constant 0 : i32
    return %c0_i32, %c0_i32_0 : i32, i32
  }
  func.func @transform_10(%arg0: i32) -> (i32, i32) {
    %c0_i32 = arith.constant 0 : i32
    %c0_i32_0 = arith.constant 0 : i32
    %c0_i32_1 = arith.constant 0 : i32
    return %c0_i32, %c0_i32_0 : i32, i32
  }
  func.func @transform_11(%arg0: i32) -> (i32, i32) {
    %c0_i32 = arith.constant 0 : i32
    %c0_i32_0 = arith.constant 0 : i32
    %c0_i32_1 = arith.constant 0 : i32
    return %c0_i32, %c0_i32_0 : i32, i32
  }
  func.func @transform_12(%arg0: i32) -> (i32, i32) {
    %c0_i32 = arith.constant 0 : i32
    %c0_i32_0 = arith.constant 0 : i32
    %c0_i32_1 = arith.constant 0 : i32
    return %c0_i32, %c0_i32_0 : i32, i32
  }
  func.func @transform_13(%arg0: i32) -> (i32, i32) {
    %c0_i32 = arith.constant 0 : i32
    %c0_i32_0 = arith.constant 0 : i32
    return %arg0, %c0_i32 : i32, i32
  }
}

</mosaic_0001>

<llo_original>
// kernel: tpu_custom_call.1
$region0: #{tpu_custom_call.1}
  #allocation0 [shape = 'u32[]', space=smem, size = 0x4, offset = 0x4, fixed_abs, tag = 'smem constant byte address 0x4 - core index']
  #allocation1 [shape = 'u32[144,128]{1,0:T(1,128)}', space=vmem, size = 0x12000, scoped, tag = 'internal scratch']
  %s0 = inlined_call_operand.vmem [shape: f32[8,95], index: 0, kind: input, shape index: {}]
  %s1 = inlined_call_operand.vmem [shape: f32[95,32], index: 1, kind: input, shape index: {}]
  %s2 = inlined_call_operand.vmem [shape: f32[1,32], index: 2, kind: input, shape index: {}]
  %s3 = inlined_call_operand.vmem [shape: f32[1,32], index: 3, kind: input, shape index: {}]
  %s4 = inlined_call_operand.vmem [shape: f32[32,16], index: 4, kind: input, shape index: {}]
  %s5 = inlined_call_operand.vmem [shape: f32[1,16], index: 5, kind: input, shape index: {}]
  %s6 = inlined_call_operand.vmem [shape: f32[1,16], index: 6, kind: input, shape index: {}]
  %s7 = inlined_call_operand.vmem [shape: f32[16,8], index: 7, kind: input, shape index: {}]
  %s8 = inlined_call_operand.vmem [shape: f32[1,8], index: 8, kind: input, shape index: {}]
  %s9 = inlined_call_operand.vmem [shape: f32[1,8], index: 9, kind: input, shape index: {}]
  %s10 = inlined_call_operand.vmem [shape: f32[8,6], index: 10, kind: input, shape index: {}]
  %s11 = inlined_call_operand.vmem [shape: f32[1,6], index: 11, kind: input, shape index: {}]
  %s12 = inlined_call_operand.vmem [shape: f32[1,6], index: 12, kind: input, shape index: {}]
  %s13 = inlined_call_operand.hbm [shape: f32[8,6], index: 13, kind: output, shape index: {}]
  %s14 = sld [smem:[#allocation0]]
  $region62: #{tpu_custom_call.1} parent=0
    _
  %s16 = ssub.s32 1, %s14
  %s17 = scalar_select 0, %s16, %s14
  $region1: #{tpu_custom_call.1} parent=0
    #allocation2 [shape = 'u8[4096]{0}', space=vmem, size = 0x1000, scoped, tag = 'output window, operand 0, single buffered']
    #allocation3 [shape = 's32[1]{0}', space=sflag, size = 0x4, scoped, tag = 'scoped memory for tpu_custom_call.1']
    %18 = vsyncpa [#allocation3], 0
    // Predicated region
    $region2: #{tpu_custom_call.1} parent=1 // pred_check
      _
    $region3: #{tpu_custom_call.1} parent=1 // pred_check_branch
      %20 = sbr.rel (0) target = $region5
    $region4: #{tpu_custom_call.1} parent=1 // pred_region
      _
    $region5: #{tpu_custom_call.1} parent=1 // pred_fallthru
      _
    // Predicated region
    $region6: #{tpu_custom_call.1} parent=1 // pred_check
      _
    $region7: #{tpu_custom_call.1} parent=1 // pred_check_branch
      %22 = sbr.rel (0) target = $region9
    $region8: #{tpu_custom_call.1} parent=1 // pred_region
      _
    $region9: #{tpu_custom_call.1} parent=1 // pred_fallthru
      _
    // Predicated region
    $region10: #{tpu_custom_call.1} parent=1 // pred_check
      _
    $region11: #{tpu_custom_call.1} parent=1 // pred_check_branch
      %24 = sbr.rel (0) target = $region13
    $region12: #{tpu_custom_call.1} parent=1 // pred_region
      _
    $region13: #{tpu_custom_call.1} parent=1 // pred_fallthru
      _
    // Predicated region
    $region14: #{tpu_custom_call.1} parent=1 // pred_check
      _
    $region15: #{tpu_custom_call.1} parent=1 // pred_check_branch
      %26 = sbr.rel (0) target = $region17
    $region16: #{tpu_custom_call.1} parent=1 // pred_region
      _
    $region17: #{tpu_custom_call.1} parent=1 // pred_fallthru
      _
    // Predicated region
    $region18: #{tpu_custom_call.1} parent=1 // pred_check
      _
    $region19: #{tpu_custom_call.1} parent=1 // pred_check_branch
      %28 = sbr.rel (0) target = $region21
    $region20: #{tpu_custom_call.1} parent=1 // pred_region
      _
    $region21: #{tpu_custom_call.1} parent=1 // pred_fallthru
      _
    // Predicated region
    $region22: #{tpu_custom_call.1} parent=1 // pred_check
      _
    $region23: #{tpu_custom_call.1} parent=1 // pred_check_branch
      %30 = sbr.rel (0) target = $region25
    $region24: #{tpu_custom_call.1} parent=1 // pred_region
      _
    $region25: #{tpu_custom_call.1} parent=1 // pred_fallthru
      _
    // Predicated region
    $region26: #{tpu_custom_call.1} parent=1 // pred_check
      _
    $region27: #{tpu_custom_call.1} parent=1 // pred_check_branch
      %32 = sbr.rel (0) target = $region29
    $region28: #{tpu_custom_call.1} parent=1 // pred_region
      _
    $region29: #{tpu_custom_call.1} parent=1 // pred_fallthru
      _
    // Predicated region
    $region30: #{tpu_custom_call.1} parent=1 // pred_check
      _
    $region31: #{tpu_custom_call.1} parent=1 // pred_check_branch
      %34 = sbr.rel (0) target = $region33
    $region32: #{tpu_custom_call.1} parent=1 // pred_region
      _
    $region33: #{tpu_custom_call.1} parent=1 // pred_fallthru
      _
    // Predicated region
    $region34: #{tpu_custom_call.1} parent=1 // pred_check
      _
    $region35: #{tpu_custom_call.1} parent=1 // pred_check_branch
      %36 = sbr.rel (0) target = $region37
    $region36: #{tpu_custom_call.1} parent=1 // pred_region
      _
    $region37: #{tpu_custom_call.1} parent=1 // pred_fallthru
      _
    // Predicated region
    $region38: #{tpu_custom_call.1} parent=1 // pred_check
      _
    $region39: #{tpu_custom_call.1} parent=1 // pred_check_branch
      %38 = sbr.rel (0) target = $region41
    $region40: #{tpu_custom_call.1} parent=1 // pred_region
      _
    $region41: #{tpu_custom_call.1} parent=1 // pred_fallthru
      _
    // Predicated region
    $region42: #{tpu_custom_call.1} parent=1 // pred_check
      _
    $region43: #{tpu_custom_call.1} parent=1 // pred_check_branch
      %40 = sbr.rel (0) target = $region45
    $region44: #{tpu_custom_call.1} parent=1 // pred_region
      _
    $region45: #{tpu_custom_call.1} parent=1 // pred_fallthru
      _
    // Predicated region
    $region46: #{tpu_custom_call.1} parent=1 // pred_check
      _
    $region47: #{tpu_custom_call.1} parent=1 // pred_check_branch
      %42 = sbr.rel (0) target = $region49
    $region48: #{tpu_custom_call.1} parent=1 // pred_region
      _
    $region49: #{tpu_custom_call.1} parent=1 // pred_fallthru
      _
    // Predicated region
    $region50: #{tpu_custom_call.1} parent=1 // pred_check
      _
    $region51: #{tpu_custom_call.1} parent=1 // pred_check_branch
      %44 = sbr.rel (0) target = $region53
    $region52: #{tpu_custom_call.1} parent=1 // pred_region
      _
    $region53: #{tpu_custom_call.1} parent=1 // pred_fallthru
      _
    %v45 = vld [vmem:[%s0] sm:$0xff]
    %v46 = vld [vmem:[%s1] sm:$0xff]
    %v47 = vld [vmem:[%s1 + $0x8] sm:$0xff]
    %v48 = vld [vmem:[%s1 + $0x10] sm:$0xff]
    %v49 = vld [vmem:[%s1 + $0x18] sm:$0xff]
    %v50 = vld [vmem:[%s1 + $0x20] sm:$0xff]
    %v51 = vld [vmem:[%s1 + $0x28] sm:$0xff]
    %v52 = vld [vmem:[%s1 + $0x30] sm:$0xff]
    %v53 = vld [vmem:[%s1 + $0x38] sm:$0xff]
    %v54 = vld [vmem:[%s1 + $0x40] sm:$0xff]
    %v55 = vld [vmem:[%s1 + $0x48] sm:$0xff]
    %v56 = vld [vmem:[%s1 + $0x50] sm:$0xff]
    %v57 = vld [vmem:[%s1 + $0x58] sm:$0x7f]
    %vm58 = vcmask 777216
    %v60 = vsel %vm58, %v45, 0
    %vm62 = vcmask 1046528
    %v64 = vsel %vm62, %v57, 0
    %66 = vmatprep.subr.mxu0 0.0
    %67 = vmatpush1.msra.mxu0 0.0
    %68 = vmatprep.subr.mxu0 0.0
    %69 = vmatpush1.msra.mxu0 0.0
    %70 = vmatprep.subr.mxu0 0.0
    %71 = vmatpush1.msra.mxu0 0.0
    %72 = vmatprep.subr.mxu0 0.0
    %73 = vmatpush1.msra.mxu0 0.0
    %74 = vmatprep.subr.mxu0 0.0
    %75 = vmatpush1.msra.mxu0 %v64
    %76 = vmatprep.subr.mxu0 0.0
    %77 = vmatpush1.msra.mxu0 %v56
    %78 = vmatprep.subr.mxu0 0.0
    %79 = vmatpush1.msra.mxu0 %v55
    %80 = vmatprep.subr.mxu0 0.0
    %81 = vmatpush1.msra.mxu0 %v54
    %82 = vmatprep.subr.mxu0 0.0
    %83 = vmatpush1.msra.mxu0 %v53
    %84 = vmatprep.subr.mxu0 0.0
    %85 = vmatpush1.msra.mxu0 %v52
    %86 = vmatprep.subr.mxu0 0.0
    %87 = vmatpush1.msra.mxu0 %v51
    %88 = vmatprep.subr.mxu0 0.0
    %89 = vmatpush1.msra.mxu0 %v50
    %90 = vmatprep.subr.mxu0 0.0
    %91 = vmatpush1.msra.mxu0 %v49
    %92 = vmatprep.subr.mxu0 0.0
    %93 = vmatpush1.msra.mxu0 %v48
    %94 = vmatprep.subr.mxu0 0.0
    %95 = vmatpush1.msra.mxu0 %v47
    %96 = vmatprep.subr.mxu0 0.0
    %97 = vmatpush1.msra.mxu0 %v46
    %98 = vmatprep.subr.mxu0 0.0
    %99 = vmatpush2.msra.mxu0 0.0
    %100 = vmatprep.subr.mxu0 0.0
    %101 = vmatpush2.msra.mxu0 0.0
    %102 = vmatprep.subr.mxu0 0.0
    %103 = vmatpush2.msra.mxu0 0.0
    %104 = vmatprep.subr.mxu0 0.0
    %105 = vmatpush2.msra.mxu0 0.0
    %106 = vmatprep.subr.mxu0 0.0
    %107 = vmatpush2.msra.mxu0 0.0
    %108 = vmatprep.subr.mxu0 0.0
    %109 = vmatpush2.msra.mxu0 0.0
    %110 = vmatprep.subr.mxu0 0.0
    %111 = vmatpush2.msra.mxu0 0.0
    %112 = vmatprep.subr.mxu0 0.0
    %113 = vmatpush2.msra.mxu0 0.0
    %114 = vmatprep.subr.mxu0 0.0
    %115 = vmatpush2.msra.mxu0 0.0
    %116 = vmatprep.subr.mxu0 0.0
    %117 = vmatpush2.msra.mxu0 0.0
    %118 = vmatprep.subr.mxu0 0.0
    %119 = vmatpush2.msra.mxu0 0.0
    %120 = vmatprep.subr.mxu0 0.0
    %121 = vmatpush2.msra.mxu0 0.0
    %122 = vmatprep.subr.mxu0 0.0
    %123 = vmatpush2.msra.mxu0 0.0
    %124 = vmatprep.subr.mxu0 0.0
    %125 = vmatpush2.msra.mxu0 0.0
    %126 = vmatprep.subr.mxu0 0.0
    %127 = vmatpush2.msra.mxu0 0.0
    %128 = vmatprep.subr.mxu0 0.0
    %129 = vmatpush2.msra.mxu0 0.0
    %130 = vmatprep.mubr.f32.mxu0 0.0
    %131 = vmatmul.mubr.f32.gmra.mxu0 %v60
    %v132 = vpop.f32.mrf.mxu0
    %v133 = vadd.f32 0.0, %v132
    %v134 = vpop.f32.mrf.mxu0
    %135 = vdwg.mxu0
    %v136 = vsub.f32 0.0, %v133
    %v137 = vmul.f32 %v136, 1.442695
    %v138 = vpow.pop %v137
    %v139 = vadd.f32 %v138, 1.0
    %v140 = vrcp.pop %v139
    %v141 = vmul.f32 1.0, %v140
    %v142 = vmul.f32 %v133, %v141
    %v143 = vld [vmem:[%s2] sm:$0x1]
    %v145 = vlaneseq
    %v146 = vshrl.u32 %v145, 7
    %v147 = vsub.s32 0, %v146
    %v148 = vrot.slane %v143, %v147
    %v150 = vmul.f32 %v142, %v148
    %v151 = vld [vmem:[%s3] sm:$0x1]
    %v153 = vlaneseq
    %v154 = vshrl.u32 %v153, 7
    %v155 = vsub.s32 0, %v154
    %v156 = vrot.slane %v151, %v155
    %v158 = vadd.f32 %v150, %v156
    %v159 = vld [vmem:[%s4] sm:$0xff]
    %v160 = vld [vmem:[%s4 + $0x8] sm:$0xff]
    %v161 = vld [vmem:[%s4 + $0x10] sm:$0xff]
    %v162 = vld [vmem:[%s4 + $0x18] sm:$0xff]
    %vm163 = vcmask 261120
    %v165 = vsel %vm163, %v158, 0
    %167 = vmatprep.subr.mxu0 0.0
    %168 = vmatpush1.msra.mxu0 0.0
    %169 = vmatprep.subr.mxu0 0.0
    %170 = vmatpush1.msra.mxu0 0.0
    %171 = vmatprep.subr.mxu0 0.0
    %172 = vmatpush1.msra.mxu0 0.0
    %173 = vmatprep.subr.mxu0 0.0
    %174 = vmatpush1.msra.mxu0 0.0
    %175 = vmatprep.subr.mxu0 0.0
    %176 = vmatpush1.msra.mxu0 0.0
    %177 = vmatprep.subr.mxu0 0.0
    %178 = vmatpush1.msra.mxu0 0.0
    %179 = vmatprep.subr.mxu0 0.0
    %180 = vmatpush1.msra.mxu0 0.0
    %181 = vmatprep.subr.mxu0 0.0
    %182 = vmatpush1.msra.mxu0 0.0
    %183 = vmatprep.subr.mxu0 0.0
    %184 = vmatpush1.msra.mxu0 0.0
    %185 = vmatprep.subr.mxu0 0.0
    %186 = vmatpush1.msra.mxu0 0.0
    %187 = vmatprep.subr.mxu0 0.0
    %188 = vmatpush1.msra.mxu0 0.0
    %189 = vmatprep.subr.mxu0 0.0
    %190 = vmatpush1.msra.mxu0 0.0
    %191 = vmatprep.subr.mxu0 0.0
    %192 = vmatpush1.msra.mxu0 %v162
    %193 = vmatprep.subr.mxu0 0.0
    %194 = vmatpush1.msra.mxu0 %v161
    %195 = vmatprep.subr.mxu0 0.0
    %196 = vmatpush1.msra.mxu0 %v160
    %197 = vmatprep.subr.mxu0 0.0
    %198 = vmatpush1.msra.mxu0 %v159
    %199 = vmatprep.subr.mxu0 0.0
    %200 = vmatpush2.msra.mxu0 0.0
    %201 = vmatprep.subr.mxu0 0.0
    %202 = vmatpush2.msra.mxu0 0.0
    %203 = vmatprep.subr.mxu0 0.0
    %204 = vmatpush2.msra.mxu0 0.0
    %205 = vmatprep.subr.mxu0 0.0
    %206 = vmatpush2.msra.mxu0 0.0
    %207 = vmatprep.subr.mxu0 0.0
    %208 = vmatpush2.msra.mxu0 0.0
    %209 = vmatprep.subr.mxu0 0.0
    %210 = vmatpush2.msra.mxu0 0.0
    %211 = vmatprep.subr.mxu0 0.0
    %212 = vmatpush2.msra.mxu0 0.0
    %213 = vmatprep.subr.mxu0 0.0
    %214 = vmatpush2.msra.mxu0 0.0
    %215 = vmatprep.subr.mxu0 0.0
    %216 = vmatpush2.msra.mxu0 0.0
    %217 = vmatprep.subr.mxu0 0.0
    %218 = vmatpush2.msra.mxu0 0.0
    %219 = vmatprep.subr.mxu0 0.0
    %220 = vmatpush2.msra.mxu0 0.0
    %221 = vmatprep.subr.mxu0 0.0
    %222 = vmatpush2.msra.mxu0 0.0
    %223 = vmatprep.subr.mxu0 0.0
    %224 = vmatpush2.msra.mxu0 0.0
    %225 = vmatprep.subr.mxu0 0.0
    %226 = vmatpush2.msra.mxu0 0.0
    %227 = vmatprep.subr.mxu0 0.0
    %228 = vmatpush2.msra.mxu0 0.0
    %229 = vmatprep.subr.mxu0 0.0
    %230 = vmatpush2.msra.mxu0 0.0
    %231 = vmatprep.mubr.f32.mxu0 0.0
    %232 = vmatmul.mubr.f32.gmra.mxu0 %v165
    %v233 = vpop.f32.mrf.mxu0
    %v234 = vadd.f32 0.0, %v233
    %v235 = vpop.f32.mrf.mxu0
    %236 = vdwg.mxu0
    %v237 = vsub.f32 0.0, %v234
    %v238 = vmul.f32 %v237, 1.442695
    %v239 = vpow.pop %v238
    %v240 = vadd.f32 %v239, 1.0
    %v241 = vrcp.pop %v240
    %v242 = vmul.f32 1.0, %v241
    %v243 = vmul.f32 %v234, %v242
    %v244 = vld [vmem:[%s5] sm:$0x1]
    %v246 = vlaneseq
    %v247 = vshrl.u32 %v246, 7
    %v248 = vsub.s32 0, %v247
    %v249 = vrot.slane %v244, %v248
    %v251 = vmul.f32 %v243, %v249
    %v252 = vld [vmem:[%s6] sm:$0x1]
    %v254 = vlaneseq
    %v255 = vshrl.u32 %v254, 7
    %v256 = vsub.s32 0, %v255
    %v257 = vrot.slane %v252, %v256
    %v259 = vadd.f32 %v251, %v257
    %v260 = vld [vmem:[%s7] sm:$0xff]
    %v261 = vld [vmem:[%s7 + $0x8] sm:$0xff]
    %vm262 = vcmask 130048
    %v264 = vsel %vm262, %v259, 0
    %266 = vmatprep.subr.mxu0 0.0
    %267 = vmatpush1.msra.mxu0 0.0
    %268 = vmatprep.subr.mxu0 0.0
    %269 = vmatpush1.msra.mxu0 0.0
    %270 = vmatprep.subr.mxu0 0.0
    %271 = vmatpush1.msra.mxu0 0.0
    %272 = vmatprep.subr.mxu0 0.0
    %273 = vmatpush1.msra.mxu0 0.0
    %274 = vmatprep.subr.mxu0 0.0
    %275 = vmatpush1.msra.mxu0 0.0
    %276 = vmatprep.subr.mxu0 0.0
    %277 = vmatpush1.msra.mxu0 0.0
    %278 = vmatprep.subr.mxu0 0.0
    %279 = vmatpush1.msra.mxu0 0.0
    %280 = vmatprep.subr.mxu0 0.0
    %281 = vmatpush1.msra.mxu0 0.0
    %282 = vmatprep.subr.mxu0 0.0
    %283 = vmatpush1.msra.mxu0 0.0
    %284 = vmatprep.subr.mxu0 0.0
    %285 = vmatpush1.msra.mxu0 0.0
    %286 = vmatprep.subr.mxu0 0.0
    %287 = vmatpush1.msra.mxu0 0.0
    %288 = vmatprep.subr.mxu0 0.0
    %289 = vmatpush1.msra.mxu0 0.0
    %290 = vmatprep.subr.mxu0 0.0
    %291 = vmatpush1.msra.mxu0 0.0
    %292 = vmatprep.subr.mxu0 0.0
    %293 = vmatpush1.msra.mxu0 0.0
    %294 = vmatprep.subr.mxu0 0.0
    %295 = vmatpush1.msra.mxu0 %v261
    %296 = vmatprep.subr.mxu0 0.0
    %297 = vmatpush1.msra.mxu0 %v260
    %298 = vmatprep.subr.mxu0 0.0
    %299 = vmatpush2.msra.mxu0 0.0
    %300 = vmatprep.subr.mxu0 0.0
    %301 = vmatpush2.msra.mxu0 0.0
    %302 = vmatprep.subr.mxu0 0.0
    %303 = vmatpush2.msra.mxu0 0.0
    %304 = vmatprep.subr.mxu0 0.0
    %305 = vmatpush2.msra.mxu0 0.0
    %306 = vmatprep.subr.mxu0 0.0
    %307 = vmatpush2.msra.mxu0 0.0
    %308 = vmatprep.subr.mxu0 0.0
    %309 = vmatpush2.msra.mxu0 0.0
    %310 = vmatprep.subr.mxu0 0.0
    %311 = vmatpush2.msra.mxu0 0.0
    %312 = vmatprep.subr.mxu0 0.0
    %313 = vmatpush2.msra.mxu0 0.0
    %314 = vmatprep.subr.mxu0 0.0
    %315 = vmatpush2.msra.mxu0 0.0
    %316 = vmatprep.subr.mxu0 0.0
    %317 = vmatpush2.msra.mxu0 0.0
    %318 = vmatprep.subr.mxu0 0.0
    %319 = vmatpush2.msra.mxu0 0.0
    %320 = vmatprep.subr.mxu0 0.0
    %321 = vmatpush2.msra.mxu0 0.0
    %322 = vmatprep.subr.mxu0 0.0
    %323 = vmatpush2.msra.mxu0 0.0
    %324 = vmatprep.subr.mxu0 0.0
    %325 = vmatpush2.msra.mxu0 0.0
    %326 = vmatprep.subr.mxu0 0.0
    %327 = vmatpush2.msra.mxu0 0.0
    %328 = vmatprep.subr.mxu0 0.0
    %329 = vmatpush2.msra.mxu0 0.0
    %330 = vmatprep.mubr.f32.mxu0 0.0
    %331 = vmatmul.mubr.f32.gmra.mxu0 %v264
    %v332 = vpop.f32.mrf.mxu0
    %v333 = vadd.f32 0.0, %v332
    %v334 = vpop.f32.mrf.mxu0
    %335 = vdwg.mxu0
    %v336 = vsub.f32 0.0, %v333
    %v337 = vmul.f32 %v336, 1.442695
    %v338 = vpow.pop %v337
    %v339 = vadd.f32 %v338, 1.0
    %v340 = vrcp.pop %v339
    %v341 = vmul.f32 1.0, %v340
    %v342 = vmul.f32 %v333, %v341
    %v343 = vld [vmem:[%s8] sm:$0x1]
    %v345 = vlaneseq
    %v346 = vshrl.u32 %v345, 7
    %v347 = vsub.s32 0, %v346
    %v348 = vrot.slane %v343, %v347
    %v350 = vmul.f32 %v342, %v348
    %v351 = vld [vmem:[%s9] sm:$0x1]
    %v353 = vlaneseq
    %v354 = vshrl.u32 %v353, 7
    %v355 = vsub.s32 0, %v354
    %v356 = vrot.slane %v351, %v355
    %v358 = vadd.f32 %v350, %v356
    %v359 = vld [vmem:[%s10] sm:$0xff]
    %vm360 = vcmask 64512
    %v362 = vsel %vm360, %v358, 0
    %364 = vmatprep.subr.mxu0 0.0
    %365 = vmatpush1.msra.mxu0 0.0
    %366 = vmatprep.subr.mxu0 0.0
    %367 = vmatpush1.msra.mxu0 0.0
    %368 = vmatprep.subr.mxu0 0.0
    %369 = vmatpush1.msra.mxu0 0.0
    %370 = vmatprep.subr.mxu0 0.0
    %371 = vmatpush1.msra.mxu0 0.0
    %372 = vmatprep.subr.mxu0 0.0
    %373 = vmatpush1.msra.mxu0 0.0
    %374 = vmatprep.subr.mxu0 0.0
    %375 = vmatpush1.msra.mxu0 0.0
    %376 = vmatprep.subr.mxu0 0.0
    %377 = vmatpush1.msra.mxu0 0.0
    %378 = vmatprep.subr.mxu0 0.0
    %379 = vmatpush1.msra.mxu0 0.0
    %380 = vmatprep.subr.mxu0 0.0
    %381 = vmatpush1.msra.mxu0 0.0
    %382 = vmatprep.subr.mxu0 0.0
    %383 = vmatpush1.msra.mxu0 0.0
    %384 = vmatprep.subr.mxu0 0.0
    %385 = vmatpush1.msra.mxu0 0.0
    %386 = vmatprep.subr.mxu0 0.0
    %387 = vmatpush1.msra.mxu0 0.0
    %388 = vmatprep.subr.mxu0 0.0
    %389 = vmatpush1.msra.mxu0 0.0
    %390 = vmatprep.subr.mxu0 0.0
    %391 = vmatpush1.msra.mxu0 0.0
    %392 = vmatprep.subr.mxu0 0.0
    %393 = vmatpush1.msra.mxu0 0.0
    %394 = vmatprep.subr.mxu0 0.0
    %395 = vmatpush1.msra.mxu0 %v359
    %396 = vmatprep.subr.mxu0 0.0
    %397 = vmatpush2.msra.mxu0 0.0
    %398 = vmatprep.subr.mxu0 0.0
    %399 = vmatpush2.msra.mxu0 0.0
    %400 = vmatprep.subr.mxu0 0.0
    %401 = vmatpush2.msra.mxu0 0.0
    %402 = vmatprep.subr.mxu0 0.0
    %403 = vmatpush2.msra.mxu0 0.0
    %404 = vmatprep.subr.mxu0 0.0
    %405 = vmatpush2.msra.mxu0 0.0
    %406 = vmatprep.subr.mxu0 0.0
    %407 = vmatpush2.msra.mxu0 0.0
    %408 = vmatprep.subr.mxu0 0.0
    %409 = vmatpush2.msra.mxu0 0.0
    %410 = vmatprep.subr.mxu0 0.0
    %411 = vmatpush2.msra.mxu0 0.0
    %412 = vmatprep.subr.mxu0 0.0
    %413 = vmatpush2.msra.mxu0 0.0
    %414 = vmatprep.subr.mxu0 0.0
    %415 = vmatpush2.msra.mxu0 0.0
    %416 = vmatprep.subr.mxu0 0.0
    %417 = vmatpush2.msra.mxu0 0.0
    %418 = vmatprep.subr.mxu0 0.0
    %419 = vmatpush2.msra.mxu0 0.0
    %420 = vmatprep.subr.mxu0 0.0
    %421 = vmatpush2.msra.mxu0 0.0
    %422 = vmatprep.subr.mxu0 0.0
    %423 = vmatpush2.msra.mxu0 0.0
    %424 = vmatprep.subr.mxu0 0.0
    %425 = vmatpush2.msra.mxu0 0.0
    %426 = vmatprep.subr.mxu0 0.0
    %427 = vmatpush2.msra.mxu0 0.0
    %428 = vmatprep.mubr.f32.mxu0 0.0
    %429 = vmatmul.mubr.f32.gmra.mxu0 %v362
    %v430 = vpop.f32.mrf.mxu0
    %v431 = vadd.f32 0.0, %v430
    %v432 = vpop.f32.mrf.mxu0
    %433 = vdwg.mxu0
    %v434 = vsub.f32 0.0, %v431
    %v435 = vmul.f32 %v434, 1.442695
    %v436 = vpow.pop %v435
    %v437 = vadd.f32 %v436, 1.0
    %v438 = vrcp.pop %v437
    %v439 = vmul.f32 1.0, %v438
    %v440 = vmul.f32 %v431, %v439
    %v441 = vld [vmem:[%s11] sm:$0x1]
    %v443 = vlaneseq
    %v444 = vshrl.u32 %v443, 7
    %v445 = vsub.s32 0, %v444
    %v446 = vrot.slane %v441, %v445
    %v448 = vmul.f32 %v440, %v446
    %v449 = vld [vmem:[%s12] sm:$0x1]
    %v451 = vlaneseq
    %v452 = vshrl.u32 %v451, 7
    %v453 = vsub.s32 0, %v452
    %v454 = vrot.slane %v449, %v453
    %v456 = vadd.f32 %v448, %v454
    %vm457 = vcmask 48128
    %458 = vst.msk [vmem:[#allocation2] sm:$0xff] %vm457, %v456
    // Predicated region
    $region54: #{tpu_custom_call.1} parent=1 // pred_check
      _
    $region55: #{tpu_custom_call.1} parent=1 // pred_check_branch
      %460 = sbr.rel (0) target = $region57
    $region56: #{tpu_custom_call.1} parent=1 // pred_region
      %s462 = ssub.s32 128, 128
      %463 = vsyncadd [#allocation3], %s462
      %s465 = sshll.u32 [#allocation2], 4
      %s466 = int_to_ptr.vmem [resolvable:$true] %s465
      %468 = dma.vmem_to_hbm [thread:$0]  %s466, 128, %s13, [#allocation3]
    $region57: #{tpu_custom_call.1} parent=1 // pred_fallthru
      _
    // Predicated region
    $region58: #{tpu_custom_call.1} parent=1 // pred_check
      _
    $region59: #{tpu_custom_call.1} parent=1 // pred_check_branch
      %470 = sbr.rel (0) target = $region61
    $region60: #{tpu_custom_call.1} parent=1 // pred_region
      %471 = dma.done [#allocation3], 128
    $region61: #{tpu_custom_call.1} parent=1 // pred_fallthru
      _
    %472 = vsyncpa [#allocation3], 1

</llo_original>
